<compile_context>
chip_gen: v7x
topology: tpu7x:2x2x1
jax: 0.10.0
libtpu: 0.0.40
codegen_flags: <defaults>
</compile_context>

<pallas_src>
import jax
import jax.numpy as jnp
from jax.experimental import pallas as pl
from jax.experimental.pallas import tpu as pltpu


def _make_gather_dma_kernel(batch, num_sems):
    """Builds a kernel that DMAs `batch` table rows straight into the output."""

    def kernel(labels_ref, table_hbm, out_hbm, sems):
        # labels_ref: (B,) int32 in SMEM (scalar prefetch).
        # table_hbm:  (V, H) in ANY/HBM.
        # out_hbm:    (B, H) in ANY/HBM.
        # sems:       (num_sems,) DMA semaphores (rolling window).
        def row_copy(i, slot):
            return pltpu.make_async_copy(
                table_hbm.at[pl.ds(labels_ref[i], 1), :],
                out_hbm.at[pl.ds(i, 1), :],
                sems.at[slot],
            )

        # Issue all row DMAs, keeping up to `num_sems` in flight.
        for i in range(batch):
            slot = i % num_sems
            if i >= num_sems:
                row_copy(i - num_sems, slot).wait()
            row_copy(i, slot).start()

        # Drain the remaining in-flight copies.
        for i in range(max(0, batch - num_sems), batch):
            row_copy(i, i % num_sems).wait()

    return kernel


def label_embedder_forward(
    labels,
    embedding_table,
    *,
    num_classes,
    dropout_prob,
    train,
    rng_key=None,
    force_drop_ids=None,
):
    """Equivalent of LabelEmbedder.forward(labels, train, force_drop_ids)."""
    V, H = embedding_table.shape
    use_dropout = dropout_prob > 0

    if (train and use_dropout) or (force_drop_ids is not None):
        # PyTorch's nn.Embedding would raise on index == num_classes if the
        # table has no CFG row; fail loudly instead of silently clamping.
        assert V >= num_classes + 1, (
            "label dropout requires a CFG embedding row (table must have "
            "num_classes + 1 rows)"
        )
        if force_drop_ids is None:
            assert rng_key is not None, "rng_key required for train-time label dropout"
            drop_ids = jax.random.uniform(rng_key, (labels.shape[0],)) < dropout_prob
        else:
            drop_ids = force_drop_ids == 1
        labels = jnp.where(drop_ids, num_classes, labels)

    B = labels.shape[0]
    # Clamp like jnp.take would; also guards the data-dependent DMA source.
    labels_i32 = jnp.clip(labels.astype(jnp.int32), 0, V - 1)

    num_sems = min(B, 16)  # rolling window of in-flight row DMAs

    out = pl.pallas_call(
        _make_gather_dma_kernel(B, num_sems),
        out_shape=jax.ShapeDtypeStruct((B, H), embedding_table.dtype),
        grid_spec=pltpu.PrefetchScalarGridSpec(
            num_scalar_prefetch=1,
            grid=(1,),
            in_specs=[pl.BlockSpec(memory_space=pl.ANY)],
            out_specs=pl.BlockSpec(memory_space=pl.ANY),
            scratch_shapes=[pltpu.SemaphoreType.DMA((num_sems,))],
        ),
    )(labels_i32, embedding_table)

    return out


if __name__ == "__main__":
    # Module hyperparameters (small, consistent with the PyTorch module).
    # hidden_size=128 keeps each row a full 128-lane vreg's worth of data.
    num_classes = 10
    hidden_size = 128
    dropout_prob = 0.1
    use_cfg_embedding = int(dropout_prob > 0)

    key = jax.random.PRNGKey(0)
    k_table, k_labels, k_drop = jax.random.split(key, 3)

    # Deterministic parameter init: nn.Embedding weights ~ N(0, 1).
    embedding_table = jax.random.normal(
        k_table, (num_classes + use_cfg_embedding, hidden_size), dtype=jnp.float32
    )

    batch = 8
    labels = jax.random.randint(k_labels, (batch,), 0, num_classes, dtype=jnp.int32)

    # Eval path (no dropout applied) -- deterministic, compare against reference gather.
    out_eval = label_embedder_forward(
        labels,
        embedding_table,
        num_classes=num_classes,
        dropout_prob=dropout_prob,
        train=False,
    )
    out_eval = jax.block_until_ready(out_eval)
    ref_eval = jnp.take(embedding_table, labels, axis=0)
    assert out_eval.shape == (batch, hidden_size)
    assert jnp.array_equal(out_eval, ref_eval), "mismatch vs reference gather"

    # Train path with forced drop ids (classifier-free guidance dropout).
    force_drop_ids = jnp.array([1, 0, 1, 0, 0, 0, 1, 0], dtype=jnp.int32)
    out_train = label_embedder_forward(
        labels,
        embedding_table,
        num_classes=num_classes,
        dropout_prob=dropout_prob,
        train=True,
        rng_key=k_drop,
        force_drop_ids=force_drop_ids,
    )
    out_train = jax.block_until_ready(out_train)
    dropped_labels = jnp.where(force_drop_ids == 1, num_classes, labels)
    ref_train = jnp.take(embedding_table, dropped_labels, axis=0)
    assert jnp.array_equal(out_train, ref_train), "mismatch on dropped labels"

    # Train path with stochastic dropout (just exercises the RNG branch).
    out_rng = label_embedder_forward(
        labels,
        embedding_table,
        num_classes=num_classes,
        dropout_prob=dropout_prob,
        train=True,
        rng_key=k_drop,
    )
    out_rng = jax.block_until_ready(out_rng)
    assert out_rng.shape == (batch, hidden_size)

    print("KERNEL_OK")
</pallas_src>

<mosaic_0001>
module attributes {stable_mosaic.version = 11 : i64} {
  func.func @kernel(%arg0: i32, %arg1: memref<8xi32, #tpu.memory_space<smem>>, %arg2: memref<11x128xf32, #tpu.memory_space<any>>, %arg3: memref<8x128xf32, #tpu.memory_space<any>>, %arg4: memref<8x!tpu.dma_semaphore, #tpu.memory_space<semaphore_mem>>) attributes {dimension_semantics = [#tpu.dimension_semantics<arbitrary>], iteration_bounds = array<i64: 1>, scalar_prefetch = 1 : i64, scratch_operands = 1 : i64, tpu.core_type = #tpu.core_type<tc>, window_params = [{}, {}]} {
    %c0 = arith.constant 0 : index
    %0 = memref.load %arg1[%c0] : memref<8xi32, #tpu.memory_space<smem>>
    %c0_i32 = arith.constant 0 : i32
    %c0_i32_0 = arith.constant 0 : i32
    %1 = tpu.memref_slice %arg2[%0, %c0_i32_0] : memref<11x128xf32, #tpu.memory_space<any>> -> memref<1x128xf32, #tpu.memory_space<any>>
    %c0_i32_1 = arith.constant 0 : i32
    %c0_i32_2 = arith.constant 0 : i32
    %2 = tpu.memref_slice %arg3[%c0_i32_1, %c0_i32_2] : memref<8x128xf32, #tpu.memory_space<any>> -> memref<1x128xf32, #tpu.memory_space<any>>
    %3 = tpu.memref_slice %arg4[%c0_i32] : memref<8x!tpu.dma_semaphore, #tpu.memory_space<semaphore_mem>> -> memref<1x!tpu.dma_semaphore, #tpu.memory_space<semaphore_mem>>
    %4 = tpu.memref_squeeze %3 : memref<1x!tpu.dma_semaphore, #tpu.memory_space<semaphore_mem>> -> memref<!tpu.dma_semaphore, #tpu.memory_space<semaphore_mem>>
    tpu.enqueue_dma source(%1 : memref<1x128xf32, #tpu.memory_space<any>>) target(%2 : memref<1x128xf32, #tpu.memory_space<any>>) target_semaphore(%4 : memref<!tpu.dma_semaphore, #tpu.memory_space<semaphore_mem>>)
    %c1 = arith.constant 1 : index
    %5 = memref.load %arg1[%c1] : memref<8xi32, #tpu.memory_space<smem>>
    %c1_i32 = arith.constant 1 : i32
    %c0_i32_3 = arith.constant 0 : i32
    %6 = tpu.memref_slice %arg2[%5, %c0_i32_3] : memref<11x128xf32, #tpu.memory_space<any>> -> memref<1x128xf32, #tpu.memory_space<any>>
    %c1_i32_4 = arith.constant 1 : i32
    %c0_i32_5 = arith.constant 0 : i32
    %7 = tpu.memref_slice %arg3[%c1_i32_4, %c0_i32_5] : memref<8x128xf32, #tpu.memory_space<any>> -> memref<1x128xf32, #tpu.memory_space<any>>
    %8 = tpu.memref_slice %arg4[%c1_i32] : memref<8x!tpu.dma_semaphore, #tpu.memory_space<semaphore_mem>> -> memref<1x!tpu.dma_semaphore, #tpu.memory_space<semaphore_mem>>
    %9 = tpu.memref_squeeze %8 : memref<1x!tpu.dma_semaphore, #tpu.memory_space<semaphore_mem>> -> memref<!tpu.dma_semaphore, #tpu.memory_space<semaphore_mem>>
    tpu.enqueue_dma source(%6 : memref<1x128xf32, #tpu.memory_space<any>>) target(%7 : memref<1x128xf32, #tpu.memory_space<any>>) target_semaphore(%9 : memref<!tpu.dma_semaphore, #tpu.memory_space<semaphore_mem>>)
    %c2 = arith.constant 2 : index
    %10 = memref.load %arg1[%c2] : memref<8xi32, #tpu.memory_space<smem>>
    %c2_i32 = arith.constant 2 : i32
    %c0_i32_6 = arith.constant 0 : i32
    %11 = tpu.memref_slice %arg2[%10, %c0_i32_6] : memref<11x128xf32, #tpu.memory_space<any>> -> memref<1x128xf32, #tpu.memory_space<any>>
    %c2_i32_7 = arith.constant 2 : i32
    %c0_i32_8 = arith.constant 0 : i32
    %12 = tpu.memref_slice %arg3[%c2_i32_7, %c0_i32_8] : memref<8x128xf32, #tpu.memory_space<any>> -> memref<1x128xf32, #tpu.memory_space<any>>
    %13 = tpu.memref_slice %arg4[%c2_i32] : memref<8x!tpu.dma_semaphore, #tpu.memory_space<semaphore_mem>> -> memref<1x!tpu.dma_semaphore, #tpu.memory_space<semaphore_mem>>
    %14 = tpu.memref_squeeze %13 : memref<1x!tpu.dma_semaphore, #tpu.memory_space<semaphore_mem>> -> memref<!tpu.dma_semaphore, #tpu.memory_space<semaphore_mem>>
    tpu.enqueue_dma source(%11 : memref<1x128xf32, #tpu.memory_space<any>>) target(%12 : memref<1x128xf32, #tpu.memory_space<any>>) target_semaphore(%14 : memref<!tpu.dma_semaphore, #tpu.memory_space<semaphore_mem>>)
    %c3 = arith.constant 3 : index
    %15 = memref.load %arg1[%c3] : memref<8xi32, #tpu.memory_space<smem>>
    %c3_i32 = arith.constant 3 : i32
    %c0_i32_9 = arith.constant 0 : i32
    %16 = tpu.memref_slice %arg2[%15, %c0_i32_9] : memref<11x128xf32, #tpu.memory_space<any>> -> memref<1x128xf32, #tpu.memory_space<any>>
    %c3_i32_10 = arith.constant 3 : i32
    %c0_i32_11 = arith.constant 0 : i32
    %17 = tpu.memref_slice %arg3[%c3_i32_10, %c0_i32_11] : memref<8x128xf32, #tpu.memory_space<any>> -> memref<1x128xf32, #tpu.memory_space<any>>
    %18 = tpu.memref_slice %arg4[%c3_i32] : memref<8x!tpu.dma_semaphore, #tpu.memory_space<semaphore_mem>> -> memref<1x!tpu.dma_semaphore, #tpu.memory_space<semaphore_mem>>
    %19 = tpu.memref_squeeze %18 : memref<1x!tpu.dma_semaphore, #tpu.memory_space<semaphore_mem>> -> memref<!tpu.dma_semaphore, #tpu.memory_space<semaphore_mem>>
    tpu.enqueue_dma source(%16 : memref<1x128xf32, #tpu.memory_space<any>>) target(%17 : memref<1x128xf32, #tpu.memory_space<any>>) target_semaphore(%19 : memref<!tpu.dma_semaphore, #tpu.memory_space<semaphore_mem>>)
    %c4 = arith.constant 4 : index
    %20 = memref.load %arg1[%c4] : memref<8xi32, #tpu.memory_space<smem>>
    %c4_i32 = arith.constant 4 : i32
    %c0_i32_12 = arith.constant 0 : i32
    %21 = tpu.memref_slice %arg2[%20, %c0_i32_12] : memref<11x128xf32, #tpu.memory_space<any>> -> memref<1x128xf32, #tpu.memory_space<any>>
    %c4_i32_13 = arith.constant 4 : i32
    %c0_i32_14 = arith.constant 0 : i32
    %22 = tpu.memref_slice %arg3[%c4_i32_13, %c0_i32_14] : memref<8x128xf32, #tpu.memory_space<any>> -> memref<1x128xf32, #tpu.memory_space<any>>
    %23 = tpu.memref_slice %arg4[%c4_i32] : memref<8x!tpu.dma_semaphore, #tpu.memory_space<semaphore_mem>> -> memref<1x!tpu.dma_semaphore, #tpu.memory_space<semaphore_mem>>
    %24 = tpu.memref_squeeze %23 : memref<1x!tpu.dma_semaphore, #tpu.memory_space<semaphore_mem>> -> memref<!tpu.dma_semaphore, #tpu.memory_space<semaphore_mem>>
    tpu.enqueue_dma source(%21 : memref<1x128xf32, #tpu.memory_space<any>>) target(%22 : memref<1x128xf32, #tpu.memory_space<any>>) target_semaphore(%24 : memref<!tpu.dma_semaphore, #tpu.memory_space<semaphore_mem>>)
    %c5 = arith.constant 5 : index
    %25 = memref.load %arg1[%c5] : memref<8xi32, #tpu.memory_space<smem>>
    %c5_i32 = arith.constant 5 : i32
    %c0_i32_15 = arith.constant 0 : i32
    %26 = tpu.memref_slice %arg2[%25, %c0_i32_15] : memref<11x128xf32, #tpu.memory_space<any>> -> memref<1x128xf32, #tpu.memory_space<any>>
    %c5_i32_16 = arith.constant 5 : i32
    %c0_i32_17 = arith.constant 0 : i32
    %27 = tpu.memref_slice %arg3[%c5_i32_16, %c0_i32_17] : memref<8x128xf32, #tpu.memory_space<any>> -> memref<1x128xf32, #tpu.memory_space<any>>
    %28 = tpu.memref_slice %arg4[%c5_i32] : memref<8x!tpu.dma_semaphore, #tpu.memory_space<semaphore_mem>> -> memref<1x!tpu.dma_semaphore, #tpu.memory_space<semaphore_mem>>
    %29 = tpu.memref_squeeze %28 : memref<1x!tpu.dma_semaphore, #tpu.memory_space<semaphore_mem>> -> memref<!tpu.dma_semaphore, #tpu.memory_space<semaphore_mem>>
    tpu.enqueue_dma source(%26 : memref<1x128xf32, #tpu.memory_space<any>>) target(%27 : memref<1x128xf32, #tpu.memory_space<any>>) target_semaphore(%29 : memref<!tpu.dma_semaphore, #tpu.memory_space<semaphore_mem>>)
    %c6 = arith.constant 6 : index
    %30 = memref.load %arg1[%c6] : memref<8xi32, #tpu.memory_space<smem>>
    %c6_i32 = arith.constant 6 : i32
    %c0_i32_18 = arith.constant 0 : i32
    %31 = tpu.memref_slice %arg2[%30, %c0_i32_18] : memref<11x128xf32, #tpu.memory_space<any>> -> memref<1x128xf32, #tpu.memory_space<any>>
    %c6_i32_19 = arith.constant 6 : i32
    %c0_i32_20 = arith.constant 0 : i32
    %32 = tpu.memref_slice %arg3[%c6_i32_19, %c0_i32_20] : memref<8x128xf32, #tpu.memory_space<any>> -> memref<1x128xf32, #tpu.memory_space<any>>
    %33 = tpu.memref_slice %arg4[%c6_i32] : memref<8x!tpu.dma_semaphore, #tpu.memory_space<semaphore_mem>> -> memref<1x!tpu.dma_semaphore, #tpu.memory_space<semaphore_mem>>
    %34 = tpu.memref_squeeze %33 : memref<1x!tpu.dma_semaphore, #tpu.memory_space<semaphore_mem>> -> memref<!tpu.dma_semaphore, #tpu.memory_space<semaphore_mem>>
    tpu.enqueue_dma source(%31 : memref<1x128xf32, #tpu.memory_space<any>>) target(%32 : memref<1x128xf32, #tpu.memory_space<any>>) target_semaphore(%34 : memref<!tpu.dma_semaphore, #tpu.memory_space<semaphore_mem>>)
    %c7 = arith.constant 7 : index
    %35 = memref.load %arg1[%c7] : memref<8xi32, #tpu.memory_space<smem>>
    %c7_i32 = arith.constant 7 : i32
    %c0_i32_21 = arith.constant 0 : i32
    %36 = tpu.memref_slice %arg2[%35, %c0_i32_21] : memref<11x128xf32, #tpu.memory_space<any>> -> memref<1x128xf32, #tpu.memory_space<any>>
    %c7_i32_22 = arith.constant 7 : i32
    %c0_i32_23 = arith.constant 0 : i32
    %37 = tpu.memref_slice %arg3[%c7_i32_22, %c0_i32_23] : memref<8x128xf32, #tpu.memory_space<any>> -> memref<1x128xf32, #tpu.memory_space<any>>
    %38 = tpu.memref_slice %arg4[%c7_i32] : memref<8x!tpu.dma_semaphore, #tpu.memory_space<semaphore_mem>> -> memref<1x!tpu.dma_semaphore, #tpu.memory_space<semaphore_mem>>
    %39 = tpu.memref_squeeze %38 : memref<1x!tpu.dma_semaphore, #tpu.memory_space<semaphore_mem>> -> memref<!tpu.dma_semaphore, #tpu.memory_space<semaphore_mem>>
    tpu.enqueue_dma source(%36 : memref<1x128xf32, #tpu.memory_space<any>>) target(%37 : memref<1x128xf32, #tpu.memory_space<any>>) target_semaphore(%39 : memref<!tpu.dma_semaphore, #tpu.memory_space<semaphore_mem>>)
    %c0_24 = arith.constant 0 : index
    %40 = memref.load %arg1[%c0_24] : memref<8xi32, #tpu.memory_space<smem>>
    %c0_i32_25 = arith.constant 0 : i32
    %c0_i32_26 = arith.constant 0 : i32
    %41 = tpu.memref_slice %arg2[%40, %c0_i32_26] : memref<11x128xf32, #tpu.memory_space<any>> -> memref<1x128xf32, #tpu.memory_space<any>>
    %c0_i32_27 = arith.constant 0 : i32
    %c0_i32_28 = arith.constant 0 : i32
    %42 = tpu.memref_slice %arg3[%c0_i32_27, %c0_i32_28] : memref<8x128xf32, #tpu.memory_space<any>> -> memref<1x128xf32, #tpu.memory_space<any>>
    %43 = tpu.memref_slice %arg4[%c0_i32_25] : memref<8x!tpu.dma_semaphore, #tpu.memory_space<semaphore_mem>> -> memref<1x!tpu.dma_semaphore, #tpu.memory_space<semaphore_mem>>
    %44 = tpu.memref_squeeze %43 : memref<1x!tpu.dma_semaphore, #tpu.memory_space<semaphore_mem>> -> memref<!tpu.dma_semaphore, #tpu.memory_space<semaphore_mem>>
    tpu.wait_dma2 semaphore(%44 : memref<!tpu.dma_semaphore, #tpu.memory_space<semaphore_mem>>) src(%41 : memref<1x128xf32, #tpu.memory_space<any>>) dst(%42 : memref<1x128xf32, #tpu.memory_space<any>>)
    %c1_29 = arith.constant 1 : index
    %45 = memref.load %arg1[%c1_29] : memref<8xi32, #tpu.memory_space<smem>>
    %c1_i32_30 = arith.constant 1 : i32
    %c0_i32_31 = arith.constant 0 : i32
    %46 = tpu.memref_slice %arg2[%45, %c0_i32_31] : memref<11x128xf32, #tpu.memory_space<any>> -> memref<1x128xf32, #tpu.memory_space<any>>
    %c1_i32_32 = arith.constant 1 : i32
    %c0_i32_33 = arith.constant 0 : i32
    %47 = tpu.memref_slice %arg3[%c1_i32_32, %c0_i32_33] : memref<8x128xf32, #tpu.memory_space<any>> -> memref<1x128xf32, #tpu.memory_space<any>>
    %48 = tpu.memref_slice %arg4[%c1_i32_30] : memref<8x!tpu.dma_semaphore, #tpu.memory_space<semaphore_mem>> -> memref<1x!tpu.dma_semaphore, #tpu.memory_space<semaphore_mem>>
    %49 = tpu.memref_squeeze %48 : memref<1x!tpu.dma_semaphore, #tpu.memory_space<semaphore_mem>> -> memref<!tpu.dma_semaphore, #tpu.memory_space<semaphore_mem>>
    tpu.wait_dma2 semaphore(%49 : memref<!tpu.dma_semaphore, #tpu.memory_space<semaphore_mem>>) src(%46 : memref<1x128xf32, #tpu.memory_space<any>>) dst(%47 : memref<1x128xf32, #tpu.memory_space<any>>)
    %c2_34 = arith.constant 2 : index
    %50 = memref.load %arg1[%c2_34] : memref<8xi32, #tpu.memory_space<smem>>
    %c2_i32_35 = arith.constant 2 : i32
    %c0_i32_36 = arith.constant 0 : i32
    %51 = tpu.memref_slice %arg2[%50, %c0_i32_36] : memref<11x128xf32, #tpu.memory_space<any>> -> memref<1x128xf32, #tpu.memory_space<any>>
    %c2_i32_37 = arith.constant 2 : i32
    %c0_i32_38 = arith.constant 0 : i32
    %52 = tpu.memref_slice %arg3[%c2_i32_37, %c0_i32_38] : memref<8x128xf32, #tpu.memory_space<any>> -> memref<1x128xf32, #tpu.memory_space<any>>
    %53 = tpu.memref_slice %arg4[%c2_i32_35] : memref<8x!tpu.dma_semaphore, #tpu.memory_space<semaphore_mem>> -> memref<1x!tpu.dma_semaphore, #tpu.memory_space<semaphore_mem>>
    %54 = tpu.memref_squeeze %53 : memref<1x!tpu.dma_semaphore, #tpu.memory_space<semaphore_mem>> -> memref<!tpu.dma_semaphore, #tpu.memory_space<semaphore_mem>>
    tpu.wait_dma2 semaphore(%54 : memref<!tpu.dma_semaphore, #tpu.memory_space<semaphore_mem>>) src(%51 : memref<1x128xf32, #tpu.memory_space<any>>) dst(%52 : memref<1x128xf32, #tpu.memory_space<any>>)
    %c3_39 = arith.constant 3 : index
    %55 = memref.load %arg1[%c3_39] : memref<8xi32, #tpu.memory_space<smem>>
    %c3_i32_40 = arith.constant 3 : i32
    %c0_i32_41 = arith.constant 0 : i32
    %56 = tpu.memref_slice %arg2[%55, %c0_i32_41] : memref<11x128xf32, #tpu.memory_space<any>> -> memref<1x128xf32, #tpu.memory_space<any>>
    %c3_i32_42 = arith.constant 3 : i32
    %c0_i32_43 = arith.constant 0 : i32
    %57 = tpu.memref_slice %arg3[%c3_i32_42, %c0_i32_43] : memref<8x128xf32, #tpu.memory_space<any>> -> memref<1x128xf32, #tpu.memory_space<any>>
    %58 = tpu.memref_slice %arg4[%c3_i32_40] : memref<8x!tpu.dma_semaphore, #tpu.memory_space<semaphore_mem>> -> memref<1x!tpu.dma_semaphore, #tpu.memory_space<semaphore_mem>>
    %59 = tpu.memref_squeeze %58 : memref<1x!tpu.dma_semaphore, #tpu.memory_space<semaphore_mem>> -> memref<!tpu.dma_semaphore, #tpu.memory_space<semaphore_mem>>
    tpu.wait_dma2 semaphore(%59 : memref<!tpu.dma_semaphore, #tpu.memory_space<semaphore_mem>>) src(%56 : memref<1x128xf32, #tpu.memory_space<any>>) dst(%57 : memref<1x128xf32, #tpu.memory_space<any>>)
    %c4_44 = arith.constant 4 : index
    %60 = memref.load %arg1[%c4_44] : memref<8xi32, #tpu.memory_space<smem>>
    %c4_i32_45 = arith.constant 4 : i32
    %c0_i32_46 = arith.constant 0 : i32
    %61 = tpu.memref_slice %arg2[%60, %c0_i32_46] : memref<11x128xf32, #tpu.memory_space<any>> -> memref<1x128xf32, #tpu.memory_space<any>>
    %c4_i32_47 = arith.constant 4 : i32
    %c0_i32_48 = arith.constant 0 : i32
    %62 = tpu.memref_slice %arg3[%c4_i32_47, %c0_i32_48] : memref<8x128xf32, #tpu.memory_space<any>> -> memref<1x128xf32, #tpu.memory_space<any>>
    %63 = tpu.memref_slice %arg4[%c4_i32_45] : memref<8x!tpu.dma_semaphore, #tpu.memory_space<semaphore_mem>> -> memref<1x!tpu.dma_semaphore, #tpu.memory_space<semaphore_mem>>
    %64 = tpu.memref_squeeze %63 : memref<1x!tpu.dma_semaphore, #tpu.memory_space<semaphore_mem>> -> memref<!tpu.dma_semaphore, #tpu.memory_space<semaphore_mem>>
    tpu.wait_dma2 semaphore(%64 : memref<!tpu.dma_semaphore, #tpu.memory_space<semaphore_mem>>) src(%61 : memref<1x128xf32, #tpu.memory_space<any>>) dst(%62 : memref<1x128xf32, #tpu.memory_space<any>>)
    %c5_49 = arith.constant 5 : index
    %65 = memref.load %arg1[%c5_49] : memref<8xi32, #tpu.memory_space<smem>>
    %c5_i32_50 = arith.constant 5 : i32
    %c0_i32_51 = arith.constant 0 : i32
    %66 = tpu.memref_slice %arg2[%65, %c0_i32_51] : memref<11x128xf32, #tpu.memory_space<any>> -> memref<1x128xf32, #tpu.memory_space<any>>
    %c5_i32_52 = arith.constant 5 : i32
    %c0_i32_53 = arith.constant 0 : i32
    %67 = tpu.memref_slice %arg3[%c5_i32_52, %c0_i32_53] : memref<8x128xf32, #tpu.memory_space<any>> -> memref<1x128xf32, #tpu.memory_space<any>>
    %68 = tpu.memref_slice %arg4[%c5_i32_50] : memref<8x!tpu.dma_semaphore, #tpu.memory_space<semaphore_mem>> -> memref<1x!tpu.dma_semaphore, #tpu.memory_space<semaphore_mem>>
    %69 = tpu.memref_squeeze %68 : memref<1x!tpu.dma_semaphore, #tpu.memory_space<semaphore_mem>> -> memref<!tpu.dma_semaphore, #tpu.memory_space<semaphore_mem>>
    tpu.wait_dma2 semaphore(%69 : memref<!tpu.dma_semaphore, #tpu.memory_space<semaphore_mem>>) src(%66 : memref<1x128xf32, #tpu.memory_space<any>>) dst(%67 : memref<1x128xf32, #tpu.memory_space<any>>)
    %c6_54 = arith.constant 6 : index
    %70 = memref.load %arg1[%c6_54] : memref<8xi32, #tpu.memory_space<smem>>
    %c6_i32_55 = arith.constant 6 : i32
    %c0_i32_56 = arith.constant 0 : i32
    %71 = tpu.memref_slice %arg2[%70, %c0_i32_56] : memref<11x128xf32, #tpu.memory_space<any>> -> memref<1x128xf32, #tpu.memory_space<any>>
    %c6_i32_57 = arith.constant 6 : i32
    %c0_i32_58 = arith.constant 0 : i32
    %72 = tpu.memref_slice %arg3[%c6_i32_57, %c0_i32_58] : memref<8x128xf32, #tpu.memory_space<any>> -> memref<1x128xf32, #tpu.memory_space<any>>
    %73 = tpu.memref_slice %arg4[%c6_i32_55] : memref<8x!tpu.dma_semaphore, #tpu.memory_space<semaphore_mem>> -> memref<1x!tpu.dma_semaphore, #tpu.memory_space<semaphore_mem>>
    %74 = tpu.memref_squeeze %73 : memref<1x!tpu.dma_semaphore, #tpu.memory_space<semaphore_mem>> -> memref<!tpu.dma_semaphore, #tpu.memory_space<semaphore_mem>>
    tpu.wait_dma2 semaphore(%74 : memref<!tpu.dma_semaphore, #tpu.memory_space<semaphore_mem>>) src(%71 : memref<1x128xf32, #tpu.memory_space<any>>) dst(%72 : memref<1x128xf32, #tpu.memory_space<any>>)
    %c7_59 = arith.constant 7 : index
    %75 = memref.load %arg1[%c7_59] : memref<8xi32, #tpu.memory_space<smem>>
    %c7_i32_60 = arith.constant 7 : i32
    %c0_i32_61 = arith.constant 0 : i32
    %76 = tpu.memref_slice %arg2[%75, %c0_i32_61] : memref<11x128xf32, #tpu.memory_space<any>> -> memref<1x128xf32, #tpu.memory_space<any>>
    %c7_i32_62 = arith.constant 7 : i32
    %c0_i32_63 = arith.constant 0 : i32
    %77 = tpu.memref_slice %arg3[%c7_i32_62, %c0_i32_63] : memref<8x128xf32, #tpu.memory_space<any>> -> memref<1x128xf32, #tpu.memory_space<any>>
    %78 = tpu.memref_slice %arg4[%c7_i32_60] : memref<8x!tpu.dma_semaphore, #tpu.memory_space<semaphore_mem>> -> memref<1x!tpu.dma_semaphore, #tpu.memory_space<semaphore_mem>>
    %79 = tpu.memref_squeeze %78 : memref<1x!tpu.dma_semaphore, #tpu.memory_space<semaphore_mem>> -> memref<!tpu.dma_semaphore, #tpu.memory_space<semaphore_mem>>
    tpu.wait_dma2 semaphore(%79 : memref<!tpu.dma_semaphore, #tpu.memory_space<semaphore_mem>>) src(%76 : memref<1x128xf32, #tpu.memory_space<any>>) dst(%77 : memref<1x128xf32, #tpu.memory_space<any>>)
    return
  }
}

</mosaic_0001>

<llo_original>
// kernel: tpu_custom_call.1
$region0: #{tpu_custom_call.1}
  #allocation0 [shape = 'u32[]', space=smem, size = 0x4, offset = 0x4, fixed_abs, tag = 'smem constant byte address 0x4 - core index']
  #allocation1 [shape = 'u32[144,128]{1,0:T(1,128)}', space=vmem, size = 0x12000, scoped, tag = 'internal scratch']
  #allocation2 [shape = 's32[8]{0}', space=sflag, size = 0x20, scoped, tag = 'scratch operand']
  #allocation3 [shape = 's32[1]{0}', space=sflag, size = 0x4, scoped, tag = 'scoped memory for tpu_custom_call.1']
  #allocation4 [shape = 'u8[512]{0}', space=smem, size = 0x200, scoped, tag = 'prefetched SMEM operand 0']
  #allocation5 [shape = 's32[]', space=sflag, size = 0x4, offset = 0, fixed_abs, tag = 'sflag constant byte address 0x0 - dummy sync flag']
  #allocation6 [shape = 'u32[0]{0}', space=smem, size = 0, offset = 0, fixed_abs, tag = 'smem constant byte address 0x0 - null']
  #allocation7 [shape = 's32[]', space=sflag, size = 0x4, offset = 0, fixed_abs, tag = 'sflag constant byte address 0x0 - dummy sync flag']
  #allocation8 [shape = 'u32[0]{0}', space=smem, size = 0, offset = 0, fixed_abs, tag = 'smem constant byte address 0x0 - null']
  #allocation9 [shape = 's32[]', space=sflag, size = 0x4, offset = 0, fixed_abs, tag = 'sflag constant byte address 0x0 - dummy sync flag']
  #allocation10 [shape = 'u32[0]{0}', space=smem, size = 0, offset = 0, fixed_abs, tag = 'smem constant byte address 0x0 - null']
  #allocation11 [shape = 's32[]', space=sflag, size = 0x4, offset = 0, fixed_abs, tag = 'sflag constant byte address 0x0 - dummy sync flag']
  #allocation12 [shape = 'u32[0]{0}', space=smem, size = 0, offset = 0, fixed_abs, tag = 'smem constant byte address 0x0 - null']
  #allocation13 [shape = 's32[]', space=sflag, size = 0x4, offset = 0, fixed_abs, tag = 'sflag constant byte address 0x0 - dummy sync flag']
  #allocation14 [shape = 'u32[0]{0}', space=smem, size = 0, offset = 0, fixed_abs, tag = 'smem constant byte address 0x0 - null']
  #allocation15 [shape = 's32[]', space=sflag, size = 0x4, offset = 0, fixed_abs, tag = 'sflag constant byte address 0x0 - dummy sync flag']
  #allocation16 [shape = 'u32[0]{0}', space=smem, size = 0, offset = 0, fixed_abs, tag = 'smem constant byte address 0x0 - null']
  #allocation17 [shape = 's32[]', space=sflag, size = 0x4, offset = 0, fixed_abs, tag = 'sflag constant byte address 0x0 - dummy sync flag']
  #allocation18 [shape = 'u32[0]{0}', space=smem, size = 0, offset = 0, fixed_abs, tag = 'smem constant byte address 0x0 - null']
  #allocation19 [shape = 's32[]', space=sflag, size = 0x4, offset = 0, fixed_abs, tag = 'sflag constant byte address 0x0 - dummy sync flag']
  #allocation20 [shape = 'u32[0]{0}', space=smem, size = 0, offset = 0, fixed_abs, tag = 'smem constant byte address 0x0 - null']
  %s0 = inlined_call_operand.hbm [shape: s32[8], index: 0, kind: input, shape index: {}]
  %s1 = inlined_call_operand.hbm [shape: f32[11,128], index: 1, kind: input, shape index: {}]
  %s2 = inlined_call_operand.hbm [shape: f32[8,128], index: 2, kind: output, shape index: {}]
  %s3 = sld [smem:[#allocation0]]
  $region2: #{tpu_custom_call.1} parent=0
    _
  %s5 = ssub.s32 1, %s3
  %s6 = scalar_select 0, %s5, %s3
  %8 = dma.hbm_to_smem %s0, 16, [#allocation4], [#allocation3]
  %9 = dma.done [#allocation3], 16
  %10 = sfence
  %s11 = sld [smem:[#allocation4]]
  %s12 = smul.addr %s11, 16
  %s13 = scalar_lea.hbm %s1, %s12
  %s15 = sshll.u32 1, 14
  %s16 = sxor.u32 4294967295, %s15
  %s19 = sshll.u32 3, 24
  %s20 = sxor.u32 4294967295, %s19
  %s21 = sand.u32 0, %s20
  %s23 = sor.u32 %s21, 0
  %26 = dma.general %s13, 16, %s2, [#allocation2], [#allocation5], [#allocation6], %s23, 0
  %s27 = sld [smem:[#allocation4 + $0x1]]
  %s28 = smul.addr %s27, 16
  %s29 = scalar_lea.hbm %s1, %s28
  %s30 = scalar_lea.hbm %s2, 16
  %s31 = scalar_lea.sflag [#allocation2], 1
  %s33 = sshll.u32 1, 14
  %s34 = sxor.u32 4294967295, %s33
  %s37 = sshll.u32 3, 24
  %s38 = sxor.u32 4294967295, %s37
  %s39 = sand.u32 0, %s38
  %s41 = sor.u32 %s39, 0
  %44 = dma.general %s29, 16, %s30, %s31, [#allocation7], [#allocation8], %s41, 0
  %s45 = sld [smem:[#allocation4 + $0x2]]
  %s46 = smul.addr %s45, 16
  %s47 = scalar_lea.hbm %s1, %s46
  %s48 = scalar_lea.hbm %s2, 32
  %s49 = scalar_lea.sflag [#allocation2], 2
  %s51 = sshll.u32 1, 14
  %s52 = sxor.u32 4294967295, %s51
  %s55 = sshll.u32 3, 24
  %s56 = sxor.u32 4294967295, %s55
  %s57 = sand.u32 0, %s56
  %s59 = sor.u32 %s57, 0
  %62 = dma.general %s47, 16, %s48, %s49, [#allocation9], [#allocation10], %s59, 0
  %s63 = sld [smem:[#allocation4 + $0x3]]
  %s64 = smul.addr %s63, 16
  %s65 = scalar_lea.hbm %s1, %s64
  %s66 = scalar_lea.hbm %s2, 48
  %s67 = scalar_lea.sflag [#allocation2], 3
  %s69 = sshll.u32 1, 14
  %s70 = sxor.u32 4294967295, %s69
  %s73 = sshll.u32 3, 24
  %s74 = sxor.u32 4294967295, %s73
  %s75 = sand.u32 0, %s74
  %s77 = sor.u32 %s75, 0
  %80 = dma.general %s65, 16, %s66, %s67, [#allocation11], [#allocation12], %s77, 0
  %s81 = sld [smem:[#allocation4 + $0x4]]
  %s82 = smul.addr %s81, 16
  %s83 = scalar_lea.hbm %s1, %s82
  %s84 = scalar_lea.hbm %s2, 64
  %s85 = scalar_lea.sflag [#allocation2], 4
  %s87 = sshll.u32 1, 14
  %s88 = sxor.u32 4294967295, %s87
  %s91 = sshll.u32 3, 24
  %s92 = sxor.u32 4294967295, %s91
  %s93 = sand.u32 0, %s92
  %s95 = sor.u32 %s93, 0
  %98 = dma.general %s83, 16, %s84, %s85, [#allocation13], [#allocation14], %s95, 0
  %s99 = sld [smem:[#allocation4 + $0x5]]
  %s100 = smul.addr %s99, 16
  %s101 = scalar_lea.hbm %s1, %s100
  %s102 = scalar_lea.hbm %s2, 80
  %s103 = scalar_lea.sflag [#allocation2], 5
  %s105 = sshll.u32 1, 14
  %s106 = sxor.u32 4294967295, %s105
  %s109 = sshll.u32 3, 24
  %s110 = sxor.u32 4294967295, %s109
  %s111 = sand.u32 0, %s110
  %s113 = sor.u32 %s111, 0
  %116 = dma.general %s101, 16, %s102, %s103, [#allocation15], [#allocation16], %s113, 0
  %s117 = sld [smem:[#allocation4 + $0x6]]
  %s118 = smul.addr %s117, 16
  %s119 = scalar_lea.hbm %s1, %s118
  %s120 = scalar_lea.hbm %s2, 96
  %s121 = scalar_lea.sflag [#allocation2], 6
  %s123 = sshll.u32 1, 14
  %s124 = sxor.u32 4294967295, %s123
  %s127 = sshll.u32 3, 24
  %s128 = sxor.u32 4294967295, %s127
  %s129 = sand.u32 0, %s128
  %s131 = sor.u32 %s129, 0
  %134 = dma.general %s119, 16, %s120, %s121, [#allocation17], [#allocation18], %s131, 0
  %s135 = sld [smem:[#allocation4 + $0x7]]
  %s136 = smul.addr %s135, 16
  %s137 = scalar_lea.hbm %s1, %s136
  %s138 = scalar_lea.hbm %s2, 112
  %s139 = scalar_lea.sflag [#allocation2], 7
  %s141 = sshll.u32 1, 14
  %s142 = sxor.u32 4294967295, %s141
  %s145 = sshll.u32 3, 24
  %s146 = sxor.u32 4294967295, %s145
  %s147 = sand.u32 0, %s146
  %s149 = sor.u32 %s147, 0
  %152 = dma.general %s137, 16, %s138, %s139, [#allocation19], [#allocation20], %s149, 0
  %s153 = sld [smem:[#allocation4]]
  %s154 = smul.u32 1, 1
  %s155 = sshll.u32 %s154, 4
  %156 = dma.done [#allocation2], %s155
  %s157 = sld [smem:[#allocation4 + $0x1]]
  %s158 = sshll.u32 %s154, 4
  %159 = dma.done %s31, %s158
  %s160 = sld [smem:[#allocation4 + $0x2]]
  %s161 = sshll.u32 %s154, 4
  %162 = dma.done %s49, %s161
  %s163 = sld [smem:[#allocation4 + $0x3]]
  %s164 = sshll.u32 %s154, 4
  %165 = dma.done %s67, %s164
  %s166 = sld [smem:[#allocation4 + $0x4]]
  %s167 = sshll.u32 %s154, 4
  %168 = dma.done %s85, %s167
  %s169 = sld [smem:[#allocation4 + $0x5]]
  %s170 = sshll.u32 %s154, 4
  %171 = dma.done %s103, %s170
  %s172 = sld [smem:[#allocation4 + $0x6]]
  %s173 = sshll.u32 %s154, 4
  %174 = dma.done %s121, %s173
  %s175 = sld [smem:[#allocation4 + $0x7]]
  %s176 = sshll.u32 %s154, 4
  %177 = dma.done %s139, %s176
  %178 = vsyncmov [#allocation2]
  %s179 = vpop.sfrf %178
  %p180 = scmp.eq.s32.totalorder %s179, 0
  %p181 = pneg %p180
  %183 = shalt.err (%p181)
  %s184 = scalar_lea.sflag [#allocation2], 1
  %185 = vsyncmov %s184
  %s186 = vpop.sfrf %185
  %p187 = scmp.eq.s32.totalorder %s186, 0
  %p188 = pneg %p187
  %190 = shalt.err (%p188)
  %s191 = scalar_lea.sflag [#allocation2], 2
  %192 = vsyncmov %s191
  %s193 = vpop.sfrf %192
  %p194 = scmp.eq.s32.totalorder %s193, 0
  %p195 = pneg %p194
  %197 = shalt.err (%p195)
  %s198 = scalar_lea.sflag [#allocation2], 3
  %199 = vsyncmov %s198
  %s200 = vpop.sfrf %199
  %p201 = scmp.eq.s32.totalorder %s200, 0
  %p202 = pneg %p201
  %204 = shalt.err (%p202)
  %s205 = scalar_lea.sflag [#allocation2], 4
  %206 = vsyncmov %s205
  %s207 = vpop.sfrf %206
  %p208 = scmp.eq.s32.totalorder %s207, 0
  %p209 = pneg %p208
  %211 = shalt.err (%p209)
  %s212 = scalar_lea.sflag [#allocation2], 5
  %213 = vsyncmov %s212
  %s214 = vpop.sfrf %213
  %p215 = scmp.eq.s32.totalorder %s214, 0
  %p216 = pneg %p215
  %218 = shalt.err (%p216)
  %s219 = scalar_lea.sflag [#allocation2], 6
  %220 = vsyncmov %s219
  %s221 = vpop.sfrf %220
  %p222 = scmp.eq.s32.totalorder %s221, 0
  %p223 = pneg %p222
  %225 = shalt.err (%p223)
  %s226 = scalar_lea.sflag [#allocation2], 7
  %227 = vsyncmov %s226
  %s228 = vpop.sfrf %227
  %p229 = scmp.eq.s32.totalorder %s228, 0
  %p230 = pneg %p229
  %232 = shalt.err (%p230)

</llo_original>
